<compile_context>
chip_gen: v7x
topology: tpu7x:2x2x1
jax: 0.10.0
libtpu: 0.0.40
codegen_flags: <defaults>
</compile_context>

<pallas_src>
import functools

import numpy as np
import jax
import jax.numpy as jnp
from jax.experimental import pallas as pl
from jax.experimental.pallas import tpu as pltpu


def _cnn_block_kernel(x_ref, w_ref, b_ref, o_ref, *,
                      NB, H_c, G, CiW, CoW, n_groups, pool_h, neg_slope):
    """One batch-block per grid step.

    x_ref: (NB, H_rows, G*CiW)  H-padded, tap-grouped input
           lane = j*CiW + ci*W_in + iw ; row h carries padded rows h .. h+G-1
    w_ref: (n_groups, G*CiW, CoW)  banded conv matrices (W zero-pad + tap grouping folded in)
    b_ref: (1, CoW)  bias broadcast to packed output lanes (f32)
    o_ref: (NB, H_c//pool_h, CoW)  pooled output, lane-dense
    """
    GK = G * CiW
    M = NB * H_c

    # ---- conv: n_groups matmuls with K = G*CiW, bf16 operands, f32 accumulation ----
    acc = jnp.zeros((M, CoW), dtype=jnp.float32)
    for g in range(n_groups):                      # static unroll (typically 2)
        lhs = x_ref[:, g * G:g * G + H_c, :].reshape(M, GK)
        acc = acc + jnp.dot(lhs, w_ref[g], preferred_element_type=jnp.float32)

    # ---- MaxPool2d((pool_h, 1)): reduce adjacent conv rows; CoW stays the lane dim
    #      (no sublane->lane repack). Pool pairs never cross batch rows (H_c % pool_h == 0).
    pooled = jnp.max(acc.reshape(M // pool_h, pool_h, CoW), axis=1)

    # ---- bias + LeakyReLU after pooling (both monotone, commute with the max) ----
    pooled = pooled + b_ref[...]
    pooled = jnp.where(pooled >= 0, pooled, neg_slope * pooled)
    o_ref[...] = pooled.reshape(NB, H_c // pool_h, CoW).astype(o_ref.dtype)


def pack_cnn_block_params(weight, bias, *, W_in, padding=(2, 1), pooling_size=(2, 1),
                          negative_slope=0.01, compute_dtype=jnp.bfloat16,
                          max_k_depth=256):
    """One-time packing of conv parameters into grouped banded matmul form.

    B[g, j*CiW + ci*W + iw, co*W_c + ow] = weight[co, ci, g*G + j, kw] with
    iw = ow + kw - PW (out-of-range taps dropped => W zero-padding folded in),
    and zero for padded taps g*G + j >= KH.
    """
    C_out, C_in, KH, KW = weight.shape
    PH, PW = padding
    W_c = W_in + 2 * PW - KW + 1
    CiW = C_in * W_in
    CoW = C_out * W_c

    # group taps so each MXU push uses up to max_k_depth of systolic K depth
    G = max(1, min(KH, max_k_depth // max(CiW, 1)))
    n_groups = -(-KH // G)
    KH_pad = n_groups * G

    ow = jnp.arange(W_c)
    kw = jnp.arange(KW)
    iw = ow[None, :] + kw[:, None] - PW                          # (KW, W_c)
    valid = (iw >= 0) & (iw < W_in)
    onehot = ((iw[..., None] == jnp.arange(W_in)[None, None, :])
              & valid[..., None]).astype(jnp.float32)            # (KW, W_c, W_in)
    B = jnp.einsum('oikr,rwv->kivow', weight.astype(jnp.float32), onehot)
    B = B.reshape(KH, CiW, CoW)
    B = jnp.pad(B, ((0, KH_pad - KH), (0, 0), (0, 0)))           # zero taps (exact)
    B = B.reshape(n_groups, G * CiW, CoW).astype(compute_dtype)

    b_packed = jnp.repeat(bias.astype(jnp.float32), W_c).reshape(1, CoW)

    meta = dict(C_in=C_in, C_out=C_out, KH=KH, KW=KW, PH=PH, PW=PW,
                pool_h=pooling_size[0], pool_w=pooling_size[1],
                W_in=W_in, W_c=W_c, CiW=CiW, CoW=CoW,
                G=G, n_groups=n_groups, KH_pad=KH_pad,
                neg_slope=float(negative_slope), compute_dtype=compute_dtype)
    return B, b_packed, meta


def cnn_block_apply(x_nchw, packed, *, batch_block=None):
    """Forward pass. x_nchw: (N, C_in, H, W). Returns NCHW (N, C_out, H_c//pool_h, W_c)."""
    B, b_packed, m = packed
    N, C_in, H_in, W_in = x_nchw.shape
    assert C_in == m['C_in'] and W_in == m['W_in']
    assert m['pool_w'] == 1, "module uses pooling_size=[2, 1]"

    KH, PH, pool_h = m['KH'], m['PH'], m['pool_h']
    G, n_groups, KH_pad = m['G'], m['n_groups'], m['KH_pad']
    CiW, CoW, W_c, C_out = m['CiW'], m['CoW'], m['W_c'], m['C_out']
    compute_dtype = m['compute_dtype']
    GK = G * CiW

    H_c = H_in + 2 * PH - KH + 1           # conv output height (stride=1, dilation=1)
    # TODO(synk): MaxPool2d floor-mode for odd H_c is not supported by the packed path.
    assert H_c % pool_h == 0
    H_pool = H_c // pool_h
    H_g = H_in + 2 * PH + (KH_pad - KH)    # padded rows (halo + zero-tap rows)
    H_rows = H_g - (G - 1)                 # rows after overlapping-window grouping

    # ---- batch blocking: target M >= 256 rows per step, keep >= 2 grid steps ----
    divisors = [d for d in range(1, N + 1) if N % d == 0]
    if batch_block is None:
        target = max(1, -(-256 // H_c))
        NB = max([d for d in divisors if d <= target] or [1])
        if N >= 2 and N // NB < 2:         # >=2 steps so v7x's 2 TCs both get work
            NB = max(d for d in divisors if d <= N // 2)
    else:
        NB = int(batch_block)
        assert N % NB == 0

    itemsize = np.dtype(compute_dtype).itemsize

    def _vmem_need(nb):
        x_tile = nb * H_rows * GK * itemsize
        out_tile = nb * H_pool * CoW * 4
        w_bytes = B.size * B.dtype.itemsize + b_packed.size * 4
        return 2 * (x_tile + out_tile + w_bytes)   # BlockSpec double-buffers

    VMEM_BUDGET = 48 << 20                 # headroom inside v7x's 64 MiB physical VMEM
    while _vmem_need(NB) > VMEM_BUDGET and NB > 1:
        NB = max(d for d in divisors if d < NB)
    vmem_limit = int(min(max(_vmem_need(NB) + (8 << 20), 32 << 20), 60 << 20))

    # ---- layout plumbing (wrapper, once per call) ----
    # NCHW -> (N, H, C_in*W), cast to MXU dtype, H zero-halo via jnp.pad.
    x_packed = jnp.transpose(x_nchw, (0, 2, 1, 3)).reshape(N, H_in, CiW)
    x_packed = x_packed.astype(compute_dtype)
    x_pad = jnp.pad(x_packed, ((0, 0), (PH, PH + KH_pad - KH), (0, 0)))
    # overlapping-window repack: row h carries padded rows h..h+G-1 side by side on
    # lanes -> the kernel's group-g LHS is the contiguous slice [g*G : g*G + H_c].
    if G > 1:
        x_grouped = jnp.concatenate(
            [x_pad[:, j:j + H_rows, :] for j in range(G)], axis=-1)
    else:
        x_grouped = x_pad

    kernel = functools.partial(
        _cnn_block_kernel, NB=NB, H_c=H_c, G=G, CiW=CiW, CoW=CoW,
        n_groups=n_groups, pool_h=pool_h, neg_slope=m['neg_slope'])

    # cost estimate = what the kernel actually executes (banded + zero-tap inflation)
    mxu_flops = 2 * N * H_c * (n_groups * GK) * CoW
    bytes_accessed = (x_grouped.size * x_grouped.dtype.itemsize
                      + B.size * B.dtype.itemsize
                      + b_packed.size * 4
                      + N * H_pool * CoW * 4)

    out_packed = pl.pallas_call(
        kernel,
        out_shape=jax.ShapeDtypeStruct((N, H_pool, CoW), jnp.float32),
        grid_spec=pltpu.PrefetchScalarGridSpec(
            num_scalar_prefetch=0,
            grid=(N // NB,),
            in_specs=[
                pl.BlockSpec((NB, H_rows, GK), lambda n: (n, 0, 0)),
                pl.BlockSpec((n_groups, GK, CoW), lambda n: (0, 0, 0)),
                pl.BlockSpec((1, CoW), lambda n: (0, 0)),
            ],
            out_specs=pl.BlockSpec((NB, H_pool, CoW), lambda n: (n, 0, 0)),
        ),
        compiler_params=pltpu.CompilerParams(
            dimension_semantics=("parallel",),
            vmem_limit_bytes=vmem_limit),
        cost_estimate=pl.CostEstimate(flops=int(mxu_flops), transcendentals=0,
                                      bytes_accessed=int(bytes_accessed)),
    )(x_grouped, B, b_packed)

    # unpack: (N, H_pool, C_out*W_c) -> NCHW
    out = out_packed.reshape(N, H_pool, C_out, W_c).transpose(0, 2, 1, 3)
    return out.astype(x_nchw.dtype)


def cnn_block(x_nchw, weight, bias, *, padding=(2, 1), pooling_size=(2, 1),
              negative_slope=0.01, compute_dtype=jnp.bfloat16, batch_block=None):
    """Convenience wrapper: pack params then run (use pack_cnn_block_params + apply
    directly for inference so packing is a one-time cost)."""
    packed = pack_cnn_block_params(
        weight, bias, W_in=x_nchw.shape[-1], padding=padding,
        pooling_size=pooling_size, negative_slope=negative_slope,
        compute_dtype=compute_dtype)
    return cnn_block_apply(x_nchw, packed, batch_block=batch_block)


def _reference(x, weight, bias, negative_slope=0.01, compute_dtype=jnp.float32):
    """Plain-JAX reference mirroring the PyTorch module (operand dtype selectable)."""
    y = jax.lax.conv_general_dilated(
        x.astype(compute_dtype), weight.astype(compute_dtype),
        window_strides=(1, 1), padding=((2, 2), (1, 1)),
        dimension_numbers=("NCHW", "OIHW", "NCHW"),
        preferred_element_type=jnp.float32)
    y = y + bias[None, :, None, None].astype(jnp.float32)
    y = jnp.where(y >= 0, y, negative_slope * y)
    N, C, Hc, Wc = y.shape
    return y.reshape(N, C, Hc // 2, 2, Wc).max(axis=3)


if __name__ == "__main__":
    key = jax.random.PRNGKey(0)
    k_x, k_w, k_b = jax.random.split(key, 3)

    # Small shapes consistent with the module: N=2, C_in=4, C_out=8, H=W=16.
    N, C_in, C_out, H, W = 2, 4, 8, 16, 16
    KH, KW = 5, 3

    x = jax.random.normal(k_x, (N, C_in, H, W), dtype=jnp.float32)
    # Deterministic parameter init (PyTorch Conv2d default: U(-b, b), b = 1/sqrt(fan_in)).
    fan_in = C_in * KH * KW
    bound = 1.0 / (fan_in ** 0.5)
    weight = jax.random.uniform(k_w, (C_out, C_in, KH, KW),
                                minval=-bound, maxval=bound, dtype=jnp.float32)
    bias = jax.random.uniform(k_b, (C_out,), minval=-bound, maxval=bound,
                              dtype=jnp.float32)

    # One-time parameter packing (banded + tap-grouped weights, packed bias).
    packed = pack_cnn_block_params(weight, bias, W_in=W)
    fwd = jax.jit(functools.partial(cnn_block_apply, packed=packed))

    out = fwd(x)
    jax.block_until_ready(out)
    assert out.shape == (N, C_out, H // 2, W), out.shape

    # Strict check against a reference using the same bf16 operand precision
    # (products are exact in f32; only summation order differs).
    ref_bf16 = _reference(x, weight, bias, compute_dtype=jnp.bfloat16)
    assert jnp.allclose(out, ref_bf16, atol=1e-4, rtol=1e-4), float(
        jnp.max(jnp.abs(out - ref_bf16)))

    # Loose sanity check against pure-f32 module semantics
    # (bf16 MXU operand rounding bounds the difference well under 5e-2).
    ref_f32 = _reference(x, weight, bias, compute_dtype=jnp.float32)
    assert jnp.allclose(out, ref_f32, atol=5e-2, rtol=5e-2), float(
        jnp.max(jnp.abs(out - ref_f32)))

    print("KERNEL_OK")
</pallas_src>

<mosaic_0001>
module attributes {stable_mosaic.version = 11 : i64} {
  func.func @_cnn_block_kernel(%arg0: i32, %arg1: memref<1x20x256xbf16, #tpu.memory_space<vmem>>, %arg2: memref<2x256x128xbf16, #tpu.memory_space<vmem>>, %arg3: memref<1x128xf32, #tpu.memory_space<vmem>>, %arg4: memref<1x8x128xf32, #tpu.memory_space<vmem>>) attributes {dimension_semantics = [#tpu.dimension_semantics<parallel>], iteration_bounds = array<i64: 2>, scalar_prefetch = 0 : i64, scratch_operands = 0 : i64, tpu.core_type = #tpu.core_type<tc>, window_params = [{transform_indices = @transform_0, window_bounds = array<i64: 1, 20, 256>}, {pipeline_mode = #tpu.pipeline_mode<synchronous>, transform_indices = @transform_1, window_bounds = array<i64: 2, 256, 128>}, {pipeline_mode = #tpu.pipeline_mode<synchronous>, transform_indices = @transform_2, window_bounds = array<i64: 1, 128>}, {transform_indices = @transform_3, window_bounds = array<i64: 1, 8, 128>}]} {
    %cst = arith.constant 0.000000e+00 : f32
    %0 = vector.broadcast %cst : f32 to vector<16x128xf32>
    %c0 = arith.constant 0 : index
    %c0_0 = arith.constant 0 : index
    %c0_1 = arith.constant 0 : index
    %1 = vector.load %arg1[%c0, %c0_0, %c0_1] : memref<1x20x256xbf16, #tpu.memory_space<vmem>>, vector<1x16x256xbf16>
    %2 = vector.shape_cast %1 : vector<1x16x256xbf16> to vector<16x256xbf16>
    %c0_2 = arith.constant 0 : index
    %c0_3 = arith.constant 0 : index
    %c0_4 = arith.constant 0 : index
    %3 = vector.load %arg2[%c0_2, %c0_3, %c0_4] : memref<2x256x128xbf16, #tpu.memory_space<vmem>>, vector<1x256x128xbf16>
    %4 = vector.shape_cast %3 : vector<1x256x128xbf16> to vector<256x128xbf16>
    %cst_5 = arith.constant dense<0.000000e+00> : vector<16x128xf32>
    %5 = tpu.matmul %2, %4, %cst_5 {dimension_numbers = #tpu.dot_dimension_numbers<[1], [0], [0], [1], [0, 0, 1, 1], [], []>} : vector<16x256xbf16>, vector<256x128xbf16>, vector<16x128xf32> -> vector<16x128xf32>
    %6 = arith.addf %0, %5 : vector<16x128xf32>
    %c0_6 = arith.constant 0 : index
    %c4 = arith.constant 4 : index
    %c0_7 = arith.constant 0 : index
    %7 = vector.load %arg1[%c0_6, %c4, %c0_7] : memref<1x20x256xbf16, #tpu.memory_space<vmem>>, vector<1x16x256xbf16>
    %8 = vector.shape_cast %7 : vector<1x16x256xbf16> to vector<16x256xbf16>
    %c1 = arith.constant 1 : index
    %c0_8 = arith.constant 0 : index
    %c0_9 = arith.constant 0 : index
    %9 = vector.load %arg2[%c1, %c0_8, %c0_9] : memref<2x256x128xbf16, #tpu.memory_space<vmem>>, vector<1x256x128xbf16>
    %10 = vector.shape_cast %9 : vector<1x256x128xbf16> to vector<256x128xbf16>
    %cst_10 = arith.constant dense<0.000000e+00> : vector<16x128xf32>
    %11 = tpu.matmul %8, %10, %cst_10 {dimension_numbers = #tpu.dot_dimension_numbers<[1], [0], [0], [1], [0, 0, 1, 1], [], []>} : vector<16x256xbf16>, vector<256x128xbf16>, vector<16x128xf32> -> vector<16x128xf32>
    %12 = arith.addf %6, %11 : vector<16x128xf32>
    %13 = vector.shape_cast %12 : vector<16x128xf32> to vector<8x2x128xf32>
    %cst_11 = arith.constant dense<0xFF800000> : vector<8x128xf32>
    %14 = vector.multi_reduction <maximumf>, %13, %cst_11 [1] : vector<8x2x128xf32> to vector<8x128xf32>
    %c0_12 = arith.constant 0 : index
    %c0_13 = arith.constant 0 : index
    %15 = vector.load %arg3[%c0_12, %c0_13] : memref<1x128xf32, #tpu.memory_space<vmem>>, vector<1x128xf32>
    %16 = vector.broadcast %15 : vector<1x128xf32> to vector<8x128xf32>
    %17 = arith.addf %14, %16 : vector<8x128xf32>
    %cst_14 = arith.constant 0.000000e+00 : f32
    %18 = vector.broadcast %cst_14 : f32 to vector<8x128xf32>
    %19 = arith.cmpf oge, %17, %18 : vector<8x128xf32>
    %cst_15 = arith.constant 0.00999999977 : f32
    %20 = vector.broadcast %cst_15 : f32 to vector<8x128xf32>
    %21 = arith.mulf %20, %17 : vector<8x128xf32>
    %22 = arith.select %19, %17, %21 : vector<8x128xi1>, vector<8x128xf32>
    %23 = vector.shape_cast %22 : vector<8x128xf32> to vector<1x8x128xf32>
    %c0_16 = arith.constant 0 : index
    %c0_17 = arith.constant 0 : index
    %c0_18 = arith.constant 0 : index
    %24 = vector.load %arg4[%c0_16, %c0_17, %c0_18] : memref<1x8x128xf32, #tpu.memory_space<vmem>>, vector<1x8x128xf32>
    tpu.vector_store %arg4[%c0_16, %c0_17, %c0_18], %23 {strides = array<i32>} : memref<1x8x128xf32, #tpu.memory_space<vmem>>, vector<1x8x128xf32>,
    return
  }
  func.func @transform_0(%arg0: i32) -> (i32, i32, i32) {
    %c0_i32 = arith.constant 0 : i32
    %c0_i32_0 = arith.constant 0 : i32
    %c0_i32_1 = arith.constant 0 : i32
    return %arg0, %c0_i32, %c0_i32_0 : i32, i32, i32
  }
  func.func @transform_1(%arg0: i32) -> (i32, i32, i32) {
    %c0_i32 = arith.constant 0 : i32
    %c0_i32_0 = arith.constant 0 : i32
    %c0_i32_1 = arith.constant 0 : i32
    %c0_i32_2 = arith.constant 0 : i32
    return %c0_i32, %c0_i32_0, %c0_i32_1 : i32, i32, i32
  }
  func.func @transform_2(%arg0: i32) -> (i32, i32) {
    %c0_i32 = arith.constant 0 : i32
    %c0_i32_0 = arith.constant 0 : i32
    %c0_i32_1 = arith.constant 0 : i32
    return %c0_i32, %c0_i32_0 : i32, i32
  }
  func.func @transform_3(%arg0: i32) -> (i32, i32, i32) {
    %c0_i32 = arith.constant 0 : i32
    %c0_i32_0 = arith.constant 0 : i32
    %c0_i32_1 = arith.constant 0 : i32
    return %arg0, %c0_i32, %c0_i32_0 : i32, i32, i32
  }
}

</mosaic_0001>

<llo_original>
// kernel: cnn_block_apply.1
$region0: #{cnn_block_apply.1}
  #allocation0 [shape = 'u32[]', space=smem, size = 0x4, offset = 0x4, fixed_abs, tag = 'smem constant byte address 0x4 - core index']
  #allocation1 [shape = 'u32[144,128]{1,0:T(1,128)}', space=vmem, size = 0x12000, scoped, tag = 'internal scratch']
  %s0 = inlined_call_operand.vmem [shape: bf16[2,20,256], index: 0, kind: input, shape index: {}]
  %s1 = inlined_call_operand.vmem [shape: bf16[2,256,128], index: 1, kind: input, shape index: {}]
  %s2 = inlined_call_operand.vmem [shape: f32[1,128], index: 2, kind: input, shape index: {}]
  %s3 = inlined_call_operand.vmem [shape: f32[2,8,128], index: 3, kind: output, shape index: {}]
  %s4 = sld [smem:[#allocation0]]
  $region45: #{cnn_block_apply.1} parent=0
    _
  %s6 = ssub.s32 1, %s4
  %s7 = scalar_select 0, %s6, %s4
  loop: start=0, step=1, limit=4
  $region2: #{cnn_block_apply.1} parent=0 // loop_pre_header
    _
  $region3: #{cnn_block_apply.1} parent=0 // loop_header
    %s9 = sphi 0, %s13
    %p10 = scmp.ge.s32.totalorder %s9, 4
    %s19 = sphi 0, %s21
    %s22 = sphi 0, %s19
    %s23 = sphi 0, %s22
    %s39 = sphi 0, %s23
    %s43 = sphi 0, %s43
    %s45 = sphi 0, %s43
    %s46 = sphi 0, %s45
    %s60 = sphi 0, %s46
    %s64 = sphi 0, %s64
    %s66 = sphi 0, %s64
    %s67 = sphi 0, %s66
    %s81 = sphi 0, %s67
    %s87 = sphi 0, %s89
    %s90 = sphi 0, %s87
    %s91 = sphi 0, %s90
    %s107 = sphi 0, %s91
  $region4: #{cnn_block_apply.1} parent=0 // loop_header_branch
    %12 = sbr.rel (%p10) target = $region8
  $region5: #{cnn_block_apply.1} parent=0 // loop_body
    %s14 = ssub.s32 %s9, 1
    %s15 = ssub.s32 %s9, 2
    %s16 = sadd.s32 %s9, 1
    %s17 = ssub.s32 %s9, %s16
    %p18 = scmp.eq.s32.totalorder %s17, 0
    %s20 = sadd.s32 %s19, 1
    %s21 = scalar_select %p18, %s19, %s20
    %p24 = pneg %p18
    %p25 = scmp.eq.s32.totalorder %s9, 1
    %p26 = por %p24, %p25
    %p27 = scmp.ne.s32.totalorder %s19, %s22
    %p28 = scmp.eq.s32.totalorder %s9, 0
    %p29 = por %p27, %p28
    %p30 = scmp.ne.s32.totalorder %s19, %s22
    %p31 = scmp.eq.s32.totalorder %s14, 1
    %p32 = por %p30, %p31
    %p33 = scmp.ne.s32.totalorder %s22, %s23
    %p34 = scmp.eq.s32.totalorder %s14, 0
    %p35 = por %p33, %p34
    %p36 = scmp.ne.s32.totalorder %s22, %s23
    %p37 = scmp.eq.s32.totalorder %s15, 1
    %p38 = por %p36, %p37
    %p40 = scmp.ne.s32.totalorder %s23, %s39
    %p41 = scmp.eq.s32.totalorder %s15, 0
    %p42 = por %p40, %p41
    %s44 = sadd.s32 %s43, 1
    %p47 = scmp.eq.s32.totalorder %s9, 1
    %p48 = scmp.ne.s32.totalorder %s43, %s45
    %p49 = scmp.eq.s32.totalorder %s9, 0
    %p50 = por %p48, %p49
    %p51 = scmp.ne.s32.totalorder %s43, %s45
    %p52 = scmp.eq.s32.totalorder %s14, 1
    %p53 = por %p51, %p52
    %p54 = scmp.ne.s32.totalorder %s45, %s46
    %p55 = scmp.eq.s32.totalorder %s14, 0
    %p56 = por %p54, %p55
    %p57 = scmp.ne.s32.totalorder %s45, %s46
    %p58 = scmp.eq.s32.totalorder %s15, 1
    %p59 = por %p57, %p58
    %p61 = scmp.ne.s32.totalorder %s46, %s60
    %p62 = scmp.eq.s32.totalorder %s15, 0
    %p63 = por %p61, %p62
    %s65 = sadd.s32 %s64, 1
    %p68 = scmp.eq.s32.totalorder %s9, 1
    %p69 = scmp.ne.s32.totalorder %s64, %s66
    %p70 = scmp.eq.s32.totalorder %s9, 0
    %p71 = por %p69, %p70
    %p72 = scmp.ne.s32.totalorder %s64, %s66
    %p73 = scmp.eq.s32.totalorder %s14, 1
    %p74 = por %p72, %p73
    %p75 = scmp.ne.s32.totalorder %s66, %s67
    %p76 = scmp.eq.s32.totalorder %s14, 0
    %p77 = por %p75, %p76
    %p78 = scmp.ne.s32.totalorder %s66, %s67
    %p79 = scmp.eq.s32.totalorder %s15, 1
    %p80 = por %p78, %p79
    %p82 = scmp.ne.s32.totalorder %s67, %s81
    %p83 = scmp.eq.s32.totalorder %s15, 0
    %p84 = por %p82, %p83
    %s85 = ssub.s32 %s9, %s16
    %p86 = scmp.eq.s32.totalorder %s85, 0
    %s88 = sadd.s32 %s87, 1
    %s89 = scalar_select %p86, %s87, %s88
    %p92 = pneg %p86
    %p93 = scmp.eq.s32.totalorder %s9, 1
    %p94 = por %p92, %p93
    %p95 = scmp.ne.s32.totalorder %s87, %s90
    %p96 = scmp.eq.s32.totalorder %s9, 0
    %p97 = por %p95, %p96
    %p98 = scmp.ne.s32.totalorder %s87, %s90
    %p99 = scmp.eq.s32.totalorder %s14, 1
    %p100 = por %p98, %p99
    %p101 = scmp.ne.s32.totalorder %s90, %s91
    %p102 = scmp.eq.s32.totalorder %s14, 0
    %p103 = por %p101, %p102
    %p104 = scmp.ne.s32.totalorder %s90, %s91
    %p105 = scmp.eq.s32.totalorder %s15, 1
    %p106 = por %p104, %p105
    %p108 = scmp.ne.s32.totalorder %s91, %s107
    %p109 = scmp.eq.s32.totalorder %s15, 0
    %p110 = por %p108, %p109
    %p111 = scmp.le.s32.totalorder 1, %s9
    %p112 = scmp.lt.s32.totalorder %s9, 3
    %p113 = pnand %p111, %p112
    %p114 = pneg %p113
    // Predicated region
    $region9: #{cnn_block_apply.1} parent=5 // pred_check
      _
    $region10: #{cnn_block_apply.1} parent=5 // pred_check_branch
      %116 = sbr.rel (%p113) target = $region12
    $region11: #{cnn_block_apply.1} parent=5 // pred_region
      %s117 = ssub.s32 %s9, 1
      // Predicated region
      $region13: #{cnn_block_apply.1} parent=11 // pred_check
        %p118 = pneg %p56
      $region14: #{cnn_block_apply.1} parent=11 // pred_check_branch
        %120 = sbr.rel (%p118) target = $region16
      $region15: #{cnn_block_apply.1} parent=11 // pred_region
        _
      $region16: #{cnn_block_apply.1} parent=11 // pred_fallthru
        _
      // Predicated region
      $region17: #{cnn_block_apply.1} parent=11 // pred_check
        %p121 = pneg %p77
      $region18: #{cnn_block_apply.1} parent=11 // pred_check_branch
        %123 = sbr.rel (%p121) target = $region20
      $region19: #{cnn_block_apply.1} parent=11 // pred_region
        _
      $region20: #{cnn_block_apply.1} parent=11 // pred_fallthru
        _
    $region12: #{cnn_block_apply.1} parent=5 // pred_fallthru
      _
    %p124 = scmp.lt.s32.totalorder %s9, 2
    // Predicated region
    $region21: #{cnn_block_apply.1} parent=5 // pred_check
      %p125 = pneg %p124
    $region22: #{cnn_block_apply.1} parent=5 // pred_check_branch
      %127 = sbr.rel (%p125) target = $region24
    $region23: #{cnn_block_apply.1} parent=5 // pred_region
      // Predicated region
      $region25: #{cnn_block_apply.1} parent=23 // pred_check
        %p128 = pneg %p29
      $region26: #{cnn_block_apply.1} parent=23 // pred_check_branch
        %130 = sbr.rel (%p128) target = $region28
      $region27: #{cnn_block_apply.1} parent=23 // pred_region
        %p131 = scmp.lt.s32.totalorder %s9, 1
        %s132 = scalar_select %p131, %s9, 1
        %s133 = smul.addr %s132, 6
        %s134 = smul.addr %s133, 4
        %s135 = scalar_lea.vmem %s0, %s134
      $region28: #{cnn_block_apply.1} parent=23 // pred_fallthru
        _
    $region24: #{cnn_block_apply.1} parent=5 // pred_fallthru
      _
    %p136 = scmp.le.s32.totalorder 1, %s9
    %p137 = scmp.lt.s32.totalorder %s9, 3
    %p138 = pnand %p136, %p137
    %p139 = pneg %p138
    // Predicated region
    $region29: #{cnn_block_apply.1} parent=5 // pred_check
      _
    $region30: #{cnn_block_apply.1} parent=5 // pred_check_branch
      %141 = sbr.rel (%p138) target = $region32
    $region31: #{cnn_block_apply.1} parent=5 // pred_region
      %s142 = ssub.s32 %s9, 1
      %p143 = scmp.lt.s32.totalorder %s14, 1
      %s144 = scalar_select %p143, %s14, 1
      %s145 = smul.addr %s144, 6
      %s146 = smul.addr %s145, 4
      %s147 = scalar_lea.vmem %s0, %s146
      %p148 = pneg %p35
      %p149 = pneg %p32
      %p150 = pneg %p56
      %p151 = pneg %p53
      %p152 = pneg %p77
      %p153 = pneg %p74
      %p154 = pneg %p103
      %p155 = pneg %p100
      %p156 = scmp.lt.s32.totalorder %s14, 1
      %s157 = scalar_select %p156, %s14, 1
      %s158 = smul.addr %s157, 8
      %s159 = scalar_lea.vmem %s3, %s158
      %p160 = scmp.lt.s32.totalorder %s14, 1
      %s161 = scalar_select %p160, %s14, 1
      %s162 = smul.addr %s161, 6
      %s163 = smul.addr %s162, 4
      %s164 = scalar_lea.vmem %s0, %s163
      %p165 = scmp.lt.s32.totalorder %s14, 1
      %s166 = scalar_select %p165, %s14, 1
      %s167 = smul.addr %s166, 8
      %s168 = scalar_lea.vmem %s3, %s167
      %v170 = vld [vmem:[%s164] sm:$0xff]
      %v171 = vld [vmem:[%s164 + $0x8] sm:$0xff]
      %v172 = vld [vmem:[%s1] sm:$0xf]
      %v173 = vld [vmem:[%s1 + $0x4] sm:$0xf]
      %v174 = vld [vmem:[%s1 + $0x8] sm:$0xf]
      %v175 = vld [vmem:[%s1 + $0xc] sm:$0xf]
      %v176 = vld [vmem:[%s1 + $0x10] sm:$0xf]
      %v177 = vld [vmem:[%s1 + $0x14] sm:$0xf]
      %v178 = vld [vmem:[%s1 + $0x18] sm:$0xf]
      %v179 = vld [vmem:[%s1 + $0x1c] sm:$0xf]
      %v180 = vld [vmem:[%s1 + $0x20] sm:$0xf]
      %v181 = vld [vmem:[%s1 + $0x24] sm:$0xf]
      %v182 = vld [vmem:[%s1 + $0x28] sm:$0xf]
      %v183 = vld [vmem:[%s1 + $0x2c] sm:$0xf]
      %v184 = vld [vmem:[%s1 + $0x30] sm:$0xf]
      %v185 = vld [vmem:[%s1 + $0x34] sm:$0xf]
      %v186 = vld [vmem:[%s1 + $0x38] sm:$0xf]
      %v187 = vld [vmem:[%s1 + $0x3c] sm:$0xf]
      %v188 = vld [vmem:[%s1 + $0x40] sm:$0xf]
      %v189 = vld [vmem:[%s1 + $0x44] sm:$0xf]
      %v190 = vld [vmem:[%s1 + $0x48] sm:$0xf]
      %v191 = vld [vmem:[%s1 + $0x4c] sm:$0xf]
      %v192 = vld [vmem:[%s1 + $0x50] sm:$0xf]
      %v193 = vld [vmem:[%s1 + $0x54] sm:$0xf]
      %v194 = vld [vmem:[%s1 + $0x58] sm:$0xf]
      %v195 = vld [vmem:[%s1 + $0x5c] sm:$0xf]
      %v196 = vld [vmem:[%s1 + $0x60] sm:$0xf]
      %v197 = vld [vmem:[%s1 + $0x64] sm:$0xf]
      %v198 = vld [vmem:[%s1 + $0x68] sm:$0xf]
      %v199 = vld [vmem:[%s1 + $0x6c] sm:$0xf]
      %v200 = vld [vmem:[%s1 + $0x70] sm:$0xf]
      %v201 = vld [vmem:[%s1 + $0x74] sm:$0xf]
      %v202 = vld [vmem:[%s1 + $0x78] sm:$0xf]
      %v203 = vld [vmem:[%s1 + $0x7c] sm:$0xf]
      %v204 = vld [vmem:[%s164] sm:$0xcc]
      %v205 = vld [vmem:[%s164 + $0x10] sm:$0x33]
      %s206 = scalar_lea.vmem %s1, 128
      %v207 = vld [vmem:[%s206] sm:$0xf]
      %v208 = vld [vmem:[%s206 + $0x4] sm:$0xf]
      %v209 = vld [vmem:[%s206 + $0x8] sm:$0xf]
      %v210 = vld [vmem:[%s206 + $0xc] sm:$0xf]
      %v211 = vld [vmem:[%s206 + $0x10] sm:$0xf]
      %v212 = vld [vmem:[%s206 + $0x14] sm:$0xf]
      %v213 = vld [vmem:[%s206 + $0x18] sm:$0xf]
      %v214 = vld [vmem:[%s206 + $0x1c] sm:$0xf]
      %v215 = vld [vmem:[%s206 + $0x20] sm:$0xf]
      %v216 = vld [vmem:[%s206 + $0x24] sm:$0xf]
      %v217 = vld [vmem:[%s206 + $0x28] sm:$0xf]
      %v218 = vld [vmem:[%s206 + $0x2c] sm:$0xf]
      %v219 = vld [vmem:[%s206 + $0x30] sm:$0xf]
      %v220 = vld [vmem:[%s206 + $0x34] sm:$0xf]
      %v221 = vld [vmem:[%s206 + $0x38] sm:$0xf]
      %v222 = vld [vmem:[%s206 + $0x3c] sm:$0xf]
      %v223 = vld [vmem:[%s206 + $0x40] sm:$0xf]
      %v224 = vld [vmem:[%s206 + $0x44] sm:$0xf]
      %v225 = vld [vmem:[%s206 + $0x48] sm:$0xf]
      %v226 = vld [vmem:[%s206 + $0x4c] sm:$0xf]
      %v227 = vld [vmem:[%s206 + $0x50] sm:$0xf]
      %v228 = vld [vmem:[%s206 + $0x54] sm:$0xf]
      %v229 = vld [vmem:[%s206 + $0x58] sm:$0xf]
      %v230 = vld [vmem:[%s206 + $0x5c] sm:$0xf]
      %v231 = vld [vmem:[%s206 + $0x60] sm:$0xf]
      %v232 = vld [vmem:[%s206 + $0x64] sm:$0xf]
      %v233 = vld [vmem:[%s206 + $0x68] sm:$0xf]
      %v234 = vld [vmem:[%s206 + $0x6c] sm:$0xf]
      %v235 = vld [vmem:[%s206 + $0x70] sm:$0xf]
      %v236 = vld [vmem:[%s206 + $0x74] sm:$0xf]
      %v237 = vld [vmem:[%s206 + $0x78] sm:$0xf]
      %v238 = vld [vmem:[%s206 + $0x7c] sm:$0xf]
      %v242 = vunpack.c.l.b16 %v204
      %v243 = vunpack.c.h.b16 %v204
      %v244 = vunpack.c.l.b16 %v171
      %v245 = vunpack.c.h.b16 %v171
      %v246 = vunpack.c.l.b16 %v205
      %v247 = vunpack.c.h.b16 %v205
      %v248 = vpack.c.b16 %v244, %v242
      %v249 = vpack.c.b16 %v245, %v243
      %v250 = vpack.c.b16 %v246, %v246
      %v251 = vpack.c.b16 %v247, %v247
      %vm252 = vcmask 1045504
      %v253 = vrot.slane %v248, 2
      %v254 = vrot.slane %v250, 2
      %v255 = vsel %vm252, %v253, %v254
      %v256 = vrot.slane %v249, 2
      %v257 = vrot.slane %v251, 2
      %v258 = vsel %vm252, %v256, %v257
      %v293 = vunpack.c.l.b16 %v207
      %v294 = vunpack.c.l.b16 %v208
      %v295 = vunpack.c.l.b16 %v209
      %v296 = vunpack.c.l.b16 %v210
      %v297 = vunpack.c.l.b16 %v211
      %v298 = vunpack.c.l.b16 %v212
      %v299 = vunpack.c.l.b16 %v213
      %v300 = vunpack.c.l.b16 %v214
      %v301 = vunpack.c.l.b16 %v215
      %v302 = vunpack.c.l.b16 %v216
      %v303 = vunpack.c.l.b16 %v217
      %v304 = vunpack.c.l.b16 %v218
      %v305 = vunpack.c.l.b16 %v219
      %v306 = vunpack.c.l.b16 %v220
      %v307 = vunpack.c.l.b16 %v221
      %v308 = vunpack.c.l.b16 %v222
      %v309 = vunpack.c.l.b16 %v223
      %v310 = vunpack.c.l.b16 %v224
      %v311 = vunpack.c.l.b16 %v225
      %v312 = vunpack.c.l.b16 %v226
      %v313 = vunpack.c.l.b16 %v227
      %v314 = vunpack.c.l.b16 %v228
      %v315 = vunpack.c.l.b16 %v229
      %v316 = vunpack.c.l.b16 %v230
      %v317 = vunpack.c.l.b16 %v231
      %v318 = vunpack.c.l.b16 %v232
      %v319 = vunpack.c.l.b16 %v233
      %v320 = vunpack.c.l.b16 %v234
      %v321 = vunpack.c.l.b16 %v235
      %v322 = vunpack.c.l.b16 %v236
      %v323 = vunpack.c.l.b16 %v237
      %v324 = vunpack.c.l.b16 %v238
      %v325 = vpack.c.b16 %v294, %v293
      %v326 = vpack.c.b16 %v296, %v295
      %v327 = vpack.c.b16 %v298, %v297
      %v328 = vpack.c.b16 %v300, %v299
      %v329 = vpack.c.b16 %v302, %v301
      %v330 = vpack.c.b16 %v304, %v303
      %v331 = vpack.c.b16 %v306, %v305
      %v332 = vpack.c.b16 %v308, %v307
      %v333 = vpack.c.b16 %v310, %v309
      %v334 = vpack.c.b16 %v312, %v311
      %v335 = vpack.c.b16 %v314, %v313
      %v336 = vpack.c.b16 %v316, %v315
      %v337 = vpack.c.b16 %v318, %v317
      %v338 = vpack.c.b16 %v320, %v319
      %v339 = vpack.c.b16 %v322, %v321
      %v340 = vpack.c.b16 %v324, %v323
      %357 = vmatprep.subr.bf16.mxu0 0
      %358 = vmatpush1.bf16.msra.mxu0 %v325
      %359 = vmatprep.subr.bf16.mxu0 0
      %360 = vmatpush1.bf16.msra.mxu0 %v326
      %361 = vmatprep.subr.bf16.mxu0 0
      %362 = vmatpush1.bf16.msra.mxu0 %v327
      %363 = vmatprep.subr.bf16.mxu0 0
      %364 = vmatpush1.bf16.msra.mxu0 %v328
      %365 = vmatprep.subr.bf16.mxu0 0
      %366 = vmatpush1.bf16.msra.mxu0 %v329
      %367 = vmatprep.subr.bf16.mxu0 0
      %368 = vmatpush1.bf16.msra.mxu0 %v330
      %369 = vmatprep.subr.bf16.mxu0 0
      %370 = vmatpush1.bf16.msra.mxu0 %v331
      %371 = vmatprep.subr.bf16.mxu0 0
      %372 = vmatpush1.bf16.msra.mxu0 %v332
      %373 = vmatprep.subr.bf16.mxu0 0
      %374 = vmatpush1.bf16.msra.mxu0 %v333
      %375 = vmatprep.subr.bf16.mxu0 0
      %376 = vmatpush1.bf16.msra.mxu0 %v334
      %377 = vmatprep.subr.bf16.mxu0 0
      %378 = vmatpush1.bf16.msra.mxu0 %v335
      %379 = vmatprep.subr.bf16.mxu0 0
      %380 = vmatpush1.bf16.msra.mxu0 %v336
      %381 = vmatprep.subr.bf16.mxu0 0
      %382 = vmatpush1.bf16.msra.mxu0 %v337
      %383 = vmatprep.subr.bf16.mxu0 0
      %384 = vmatpush1.bf16.msra.mxu0 %v338
      %385 = vmatprep.subr.bf16.mxu0 0
      %386 = vmatpush1.bf16.msra.mxu0 %v339
      %387 = vmatprep.subr.bf16.mxu0 0
      %388 = vmatpush1.bf16.msra.mxu0 %v340
      %389 = vmatprep.mubr.bf16.mxu0 %v258
      %390 = vmatmul.mubr.bf16.gmra.mrb[0].mxu0 %v255
      %v391 = vpop.f32.mrb[0].mxu0
      %v392 = vadd.f32 0.0, %v391
      %v393 = vpop.f32.mrb[0].mxu0
      %v394 = vpop.f32.mrb[0].mxu0
      %v395 = vadd.f32 0.0, %v394
      %v396 = vpop.f32.mrb[0].mxu0
      %397 = vdwg.mxu0
      %v399 = vunpack.c.l.b16 %v170
      %v400 = vunpack.c.h.b16 %v170
      %v401 = vpack.c.b16 %v244, %v399
      %v402 = vpack.c.b16 %v245, %v400
      %v437 = vunpack.c.l.b16 %v172
      %v438 = vunpack.c.l.b16 %v173
      %v439 = vunpack.c.l.b16 %v174
      %v440 = vunpack.c.l.b16 %v175
      %v441 = vunpack.c.l.b16 %v176
      %v442 = vunpack.c.l.b16 %v177
      %v443 = vunpack.c.l.b16 %v178
      %v444 = vunpack.c.l.b16 %v179
      %v445 = vunpack.c.l.b16 %v180
      %v446 = vunpack.c.l.b16 %v181
      %v447 = vunpack.c.l.b16 %v182
      %v448 = vunpack.c.l.b16 %v183
      %v449 = vunpack.c.l.b16 %v184
      %v450 = vunpack.c.l.b16 %v185
      %v451 = vunpack.c.l.b16 %v186
      %v452 = vunpack.c.l.b16 %v187
      %v453 = vunpack.c.l.b16 %v188
      %v454 = vunpack.c.l.b16 %v189
      %v455 = vunpack.c.l.b16 %v190
      %v456 = vunpack.c.l.b16 %v191
      %v457 = vunpack.c.l.b16 %v192
      %v458 = vunpack.c.l.b16 %v193
      %v459 = vunpack.c.l.b16 %v194
      %v460 = vunpack.c.l.b16 %v195
      %v461 = vunpack.c.l.b16 %v196
      %v462 = vunpack.c.l.b16 %v197
      %v463 = vunpack.c.l.b16 %v198
      %v464 = vunpack.c.l.b16 %v199
      %v465 = vunpack.c.l.b16 %v200
      %v466 = vunpack.c.l.b16 %v201
      %v467 = vunpack.c.l.b16 %v202
      %v468 = vunpack.c.l.b16 %v203
      %v469 = vpack.c.b16 %v438, %v437
      %v470 = vpack.c.b16 %v440, %v439
      %v471 = vpack.c.b16 %v442, %v441
      %v472 = vpack.c.b16 %v444, %v443
      %v473 = vpack.c.b16 %v446, %v445
      %v474 = vpack.c.b16 %v448, %v447
      %v475 = vpack.c.b16 %v450, %v449
      %v476 = vpack.c.b16 %v452, %v451
      %v477 = vpack.c.b16 %v454, %v453
      %v478 = vpack.c.b16 %v456, %v455
      %v479 = vpack.c.b16 %v458, %v457
      %v480 = vpack.c.b16 %v460, %v459
      %v481 = vpack.c.b16 %v462, %v461
      %v482 = vpack.c.b16 %v464, %v463
      %v483 = vpack.c.b16 %v466, %v465
      %v484 = vpack.c.b16 %v468, %v467
      %501 = vmatprep.subr.bf16.mxu0 0
      %502 = vmatpush1.bf16.msra.mxu0 %v469
      %503 = vmatprep.subr.bf16.mxu0 0
      %504 = vmatpush1.bf16.msra.mxu0 %v470
      %505 = vmatprep.subr.bf16.mxu0 0
      %506 = vmatpush1.bf16.msra.mxu0 %v471
      %507 = vmatprep.subr.bf16.mxu0 0
      %508 = vmatpush1.bf16.msra.mxu0 %v472
      %509 = vmatprep.subr.bf16.mxu0 0
      %510 = vmatpush1.bf16.msra.mxu0 %v473
      %511 = vmatprep.subr.bf16.mxu0 0
      %512 = vmatpush1.bf16.msra.mxu0 %v474
      %513 = vmatprep.subr.bf16.mxu0 0
      %514 = vmatpush1.bf16.msra.mxu0 %v475
      %515 = vmatprep.subr.bf16.mxu0 0
      %516 = vmatpush1.bf16.msra.mxu0 %v476
      %517 = vmatprep.subr.bf16.mxu0 0
      %518 = vmatpush1.bf16.msra.mxu0 %v477
      %519 = vmatprep.subr.bf16.mxu0 0
      %520 = vmatpush1.bf16.msra.mxu0 %v478
      %521 = vmatprep.subr.bf16.mxu0 0
      %522 = vmatpush1.bf16.msra.mxu0 %v479
      %523 = vmatprep.subr.bf16.mxu0 0
      %524 = vmatpush1.bf16.msra.mxu0 %v480
      %525 = vmatprep.subr.bf16.mxu0 0
      %526 = vmatpush1.bf16.msra.mxu0 %v481
      %527 = vmatprep.subr.bf16.mxu0 0
      %528 = vmatpush1.bf16.msra.mxu0 %v482
      %529 = vmatprep.subr.bf16.mxu0 0
      %530 = vmatpush1.bf16.msra.mxu0 %v483
      %531 = vmatprep.subr.bf16.mxu0 0
      %532 = vmatpush1.bf16.msra.mxu0 %v484
      %533 = vmatprep.mubr.bf16.mxu0 %v402
      %534 = vmatmul.mubr.bf16.gmra.mrb[0].mxu0 %v401
      %v535 = vpop.f32.mrb[0].mxu0
      %v536 = vadd.f32 %v392, %v535
      %v537 = vpop.f32.mrb[0].mxu0
      %v538 = vpop.f32.mrb[0].mxu0
      %v539 = vadd.f32 %v395, %v538
      %v540 = vpop.f32.mrb[0].mxu0
      %541 = vdwg.mxu0
      %v544 = vcombine.high %v536, %v536
      %v546 = vunpack.c.l.s4 1983009808
      %v547 = vunpack.c.0.s8 %v546
      %v548 = vlaneseq
      %v549 = vshrl.u32 %v548, 7
      %v550 = vsub.s32 %v547, %v549
      %v551 = vrot.slane %v536, %v550
      %v553 = vunpack.c.l.s4 1983009808
      %v554 = vunpack.c.0.s8 %v553
      %v555 = vlaneseq
      %v556 = vshrl.u32 %v555, 7
      %v557 = vsub.s32 %v554, %v556
      %v558 = vrot.slane %v544, %v557
      %v559 = vcombine.high %v551, %v551
      %v560 = vcombine.high %v558, %v558
      %v561 = vcombine.high %v539, %v539
      %v563 = vunpack.c.l.s4 1983009808
      %v564 = vunpack.c.0.s8 %v563
      %v565 = vlaneseq
      %v566 = vshrl.u32 %v565, 7
      %v567 = vsub.s32 %v564, %v566
      %v568 = vrot.slane %v539, %v567
      %v570 = vunpack.c.l.s4 1983009808
      %v571 = vunpack.c.0.s8 %v570
      %v572 = vlaneseq
      %v573 = vshrl.u32 %v572, 7
      %v574 = vsub.s32 %v571, %v573
      %v575 = vrot.slane %v561, %v574
      %v576 = vcombine.high %v568, %v568
      %v577 = vcombine.high %v575, %v575
      %vm586 = vcmask 1041408
      %v587 = vsel %vm586, %v551, -inf
      %v588 = vrot.slane %v587, 4
      %v589 = vmax.f32 %v587, %v588
      %v590 = vrot.slane %v589, 2
      %v591 = vmax.f32 %v589, %v590
      %v592 = vrot.slane %v591, 1
      %v593 = vmax.f32 %v591, %v592
      %v594 = vsel %vm586, %v559, -inf
      %v595 = vrot.slane %v594, 4
      %v596 = vmax.f32 %v594, %v595
      %v597 = vrot.slane %v596, 2
      %v598 = vmax.f32 %v596, %v597
      %v599 = vrot.slane %v598, 1
      %v600 = vmax.f32 %v598, %v599
      %v601 = vsel %vm586, %v558, -inf
      %v602 = vrot.slane %v601, 4
      %v603 = vmax.f32 %v601, %v602
      %v604 = vrot.slane %v603, 2
      %v605 = vmax.f32 %v603, %v604
      %v606 = vrot.slane %v605, 1
      %v607 = vmax.f32 %v605, %v606
      %v608 = vsel %vm586, %v560, -inf
      %v609 = vrot.slane %v608, 4
      %v610 = vmax.f32 %v608, %v609
      %v611 = vrot.slane %v610, 2
      %v612 = vmax.f32 %v610, %v611
      %v613 = vrot.slane %v612, 1
      %v614 = vmax.f32 %v612, %v613
      %v615 = vsel %vm586, %v568, -inf
      %v616 = vrot.slane %v615, 4
      %v617 = vmax.f32 %v615, %v616
      %v618 = vrot.slane %v617, 2
      %v619 = vmax.f32 %v617, %v618
      %v620 = vrot.slane %v619, 1
      %v621 = vmax.f32 %v619, %v620
      %v622 = vsel %vm586, %v576, -inf
      %v623 = vrot.slane %v622, 4
      %v624 = vmax.f32 %v622, %v623
      %v625 = vrot.slane %v624, 2
      %v626 = vmax.f32 %v624, %v625
      %v627 = vrot.slane %v626, 1
      %v628 = vmax.f32 %v626, %v627
      %v629 = vsel %vm586, %v575, -inf
      %v630 = vrot.slane %v629, 4
      %v631 = vmax.f32 %v629, %v630
      %v632 = vrot.slane %v631, 2
      %v633 = vmax.f32 %v631, %v632
      %v634 = vrot.slane %v633, 1
      %v635 = vmax.f32 %v633, %v634
      %v636 = vsel %vm586, %v577, -inf
      %v637 = vrot.slane %v636, 4
      %v638 = vmax.f32 %v636, %v637
      %v639 = vrot.slane %v638, 2
      %v640 = vmax.f32 %v638, %v639
      %v641 = vrot.slane %v640, 1
      %v642 = vmax.f32 %v640, %v641
      %v643 = vld [vmem:[%s2] sm:$0x1]
      %v645 = vlaneseq
      %v646 = vshrl.u32 %v645, 7
      %v647 = vsub.s32 0, %v646
      %v648 = vrot.slane %v643, %v647
      %v650 = vadd.f32 %v593, %v648
      %v651 = vadd.f32 %v600, %v648
      %v652 = vadd.f32 %v607, %v648
      %v653 = vadd.f32 %v614, %v648
      %v654 = vadd.f32 %v621, %v648
      %v655 = vadd.f32 %v628, %v648
      %v656 = vadd.f32 %v635, %v648
      %v657 = vadd.f32 %v642, %v648
      %vm658 = vcmp.ge.f32.partialorder %v650, 0.0
      %vm659 = vcmp.ge.f32.partialorder %v651, 0.0
      %vm660 = vcmp.ge.f32.partialorder %v652, 0.0
      %vm661 = vcmp.ge.f32.partialorder %v653, 0.0
      %vm662 = vcmp.ge.f32.partialorder %v654, 0.0
      %vm663 = vcmp.ge.f32.partialorder %v655, 0.0
      %vm664 = vcmp.ge.f32.partialorder %v656, 0.0
      %vm665 = vcmp.ge.f32.partialorder %v657, 0.0
      %v666 = vmul.f32 %v650, 0.01
      %v667 = vmul.f32 %v651, 0.01
      %v668 = vmul.f32 %v652, 0.01
      %v669 = vmul.f32 %v653, 0.01
      %v670 = vmul.f32 %v654, 0.01
      %v671 = vmul.f32 %v655, 0.01
      %v672 = vmul.f32 %v656, 0.01
      %v673 = vmul.f32 %v657, 0.01
      %v674 = vsel %vm658, %v650, %v666
      %v675 = vsel %vm659, %v651, %v667
      %v676 = vsel %vm660, %v652, %v668
      %v677 = vsel %vm661, %v653, %v669
      %v678 = vsel %vm662, %v654, %v670
      %v679 = vsel %vm663, %v655, %v671
      %v680 = vsel %vm664, %v656, %v672
      %v681 = vsel %vm665, %v657, %v673
      %v690 = vrot.slane %v675, 7
      %vm691 = vcmask 1041409
      %v692 = vsel %vm691, %v690, %v674
      %v693 = vrot.slane %v676, 6
      %vm694 = vcmask 1042434
      %v695 = vsel %vm694, %v693, %v692
      %v696 = vrot.slane %v677, 5
      %vm697 = vcmask 1043459
      %v698 = vsel %vm697, %v696, %v695
      %v699 = vrot.slane %v678, 4
      %vm700 = vcmask 1044484
      %v701 = vsel %vm700, %v699, %v698
      %v702 = vrot.slane %v679, 3
      %vm703 = vcmask 1045509
      %v704 = vsel %vm703, %v702, %v701
      %v705 = vrot.slane %v680, 2
      %vm706 = vcmask 1046534
      %v707 = vsel %vm706, %v705, %v704
      %v708 = vrot.slane %v681, 1
      %vm709 = vcmask 1047559
      %v710 = vsel %vm709, %v708, %v707
      %712 = vst [vmem:[%s168] sm:$0xff] %v710
      %p713 = scmp.lt.s32.totalorder %s14, 1
      %s714 = scalar_select %p713, %s14, 1
      %s715 = smul.addr %s714, 8
      %s716 = scalar_lea.vmem %s3, %s715
      // Predicated region
      $region33: #{cnn_block_apply.1} parent=31 // pred_check
        %p717 = pneg %p100
      $region34: #{cnn_block_apply.1} parent=31 // pred_check_branch
        %719 = sbr.rel (%p717) target = $region36
      $region35: #{cnn_block_apply.1} parent=31 // pred_region
        _
      $region36: #{cnn_block_apply.1} parent=31 // pred_fallthru
        _
    $region32: #{cnn_block_apply.1} parent=5 // pred_fallthru
      _
    %p720 = scmp.le.s32.totalorder 2, %s9
    // Predicated region
    $region37: #{cnn_block_apply.1} parent=5 // pred_check
      %p721 = pneg %p720
    $region38: #{cnn_block_apply.1} parent=5 // pred_check_branch
      %723 = sbr.rel (%p721) target = $region40
    $region39: #{cnn_block_apply.1} parent=5 // pred_region
      %s724 = ssub.s32 %s9, 2
      // Predicated region
      $region41: #{cnn_block_apply.1} parent=39 // pred_check
        %p725 = pneg %p106
      $region42: #{cnn_block_apply.1} parent=39 // pred_check_branch
        %727 = sbr.rel (%p725) target = $region44
      $region43: #{cnn_block_apply.1} parent=39 // pred_region
        %p728 = scmp.lt.s32.totalorder %s15, 1
        %s729 = scalar_select %p728, %s15, 1
        %s730 = smul.addr %s729, 8
        %s731 = scalar_lea.vmem %s3, %s730
      $region44: #{cnn_block_apply.1} parent=39 // pred_fallthru
        _
    $region40: #{cnn_block_apply.1} parent=5 // pred_fallthru
      _
  $region6: #{cnn_block_apply.1} parent=0 // loop_footer
    %s13 = sadd.s32 1, %s9
  $region7: #{cnn_block_apply.1} parent=0 // loop_footer_branch
    %8 = sbr.rel target = $region3
  $region8: #{cnn_block_apply.1} parent=0 // loop_exit
    _

</llo_original>
